<compile_context>
chip_gen: v7x
topology: tpu7x:2x2x1
jax: 0.10.0
libtpu: 0.0.40
codegen_flags: <defaults>
</compile_context>

<pallas_src>
import functools

import jax
import jax.numpy as jnp
from jax.experimental import pallas as pl
from jax.experimental.pallas import tpu as pltpu

_LANES = 128
_SUBLANES = 8
_CHUNK_ROWS = 1024                     # rows per in-kernel accumulate chunk
_BUDGET_BYTES = 8 * 1024 * 1024        # per-input, per-pipeline-buffer budget
_VMEM_LIMIT_BYTES = 40 * 1024 * 1024   # 2 inputs x 2 bufs x 8 MiB + headroom
_NUM_CORES = 2                         # v7x: 2 TCs/chip; harmless elsewhere


def _round_up(x, m):
    return (x + m - 1) // m * m


def _cdiv(a, b):
    return (a + b - 1) // b


def _mae_kernel(yp_ref, yt_ref, o_ref, acc_ref, *, n_rows, tile_rows,
                chunk_rows, steps_per_core, total_blocks, needs_mask,
                has_excess):
    c = pl.program_id(0)                    # core (parallel axis)
    i = pl.program_id(1)                    # step within this core (arbitrary)
    g = c * steps_per_core + i              # unclamped global block index

    @pl.when(i == 0)
    def _():
        acc_ref[...] = jnp.zeros_like(acc_ref)

    n_chunks = tile_rows // chunk_rows

    def tile_partial(masked):
        # Reduce this (tile_rows, 128) tile to one vreg-shaped (8,128) partial
        # sum, chunk by chunk, without materializing the full tile-sized diff.
        def body(j, acc):
            start = pl.multiple_of(j * chunk_rows, chunk_rows)
            a = yp_ref[pl.ds(start, chunk_rows), :].astype(jnp.float32)
            b = yt_ref[pl.ds(start, chunk_rows), :].astype(jnp.float32)
            d = jnp.abs(a - b)
            if masked:
                row = jax.lax.broadcasted_iota(
                    jnp.int32, (chunk_rows, _LANES), 0)
                grow = g * tile_rows + start + row
                d = jnp.where(grow < n_rows, d, 0.0)
            return acc + jnp.sum(
                d.reshape(chunk_rows // _SUBLANES, _SUBLANES, _LANES), axis=0)

        return jax.lax.fori_loop(
            0, n_chunks, body, jnp.zeros((_SUBLANES, _LANES), jnp.float32))

    if needs_mask or has_excess:
        last = total_blocks - 1

        @pl.when(g < last)
        def _():
            acc_ref[...] += tile_partial(masked=False)

        @pl.when(g == last)
        def _():
            acc_ref[...] += tile_partial(masked=needs_mask)
        # g > last: duplicated (clamped) block from the core split -> skip.
    else:
        acc_ref[...] += tile_partial(masked=False)

    @pl.when(i == pl.num_programs(1) - 1)
    def _():
        # Single cross-lane/sublane reduce per core: per-core partial sum.
        o_ref[...] = jnp.sum(acc_ref[...], keepdims=True)


def mae_loss(y_pred, y_true):
    assert y_pred.shape == y_true.shape, "L1Loss requires matching shapes"
    n = y_pred.size
    if n == 0:
        # torch.nn.L1Loss(reduction='mean') on empty input is nan.
        return jnp.float32(jnp.nan)

    yp = y_pred.reshape(-1)
    yt = y_true.reshape(-1)

    rows = n // _LANES
    main = rows * _LANES
    rem = n - main

    tail_sum = jnp.float32(0.0)
    if rem:
        # <128-element ragged tail handled in the wrapper (no full pad copy).
        tail_sum = jnp.sum(jnp.abs(yp[main:].astype(jnp.float32) -
                                   yt[main:].astype(jnp.float32)))

    if rows == 0:
        return tail_sum / jnp.float32(n)

    yp2 = (yp[:main] if rem else yp).reshape(rows, _LANES)
    yt2 = (yt[:main] if rem else yt).reshape(rows, _LANES)

    isz_p = y_pred.dtype.itemsize
    isz_t = y_true.dtype.itemsize
    # Native sublane packing: 8 (32-bit), 16 (16-bit), 32 (8-bit).
    pack = max(8, 32 // max(min(isz_p, isz_t), 1))
    budget_rows = max(pack, _BUDGET_BYTES // (_LANES * max(isz_p, isz_t)))

    tile_rows = min(budget_rows, _round_up(rows, pack))
    if tile_rows > _CHUNK_ROWS:
        tile_rows = min(_round_up(tile_rows, _CHUNK_ROWS), budget_rows)
        chunk_rows = _CHUNK_ROWS
    else:
        chunk_rows = tile_rows

    total_blocks = _cdiv(rows, tile_rows)
    num_cores = _NUM_CORES if total_blocks >= _NUM_CORES else 1
    steps_per_core = _cdiv(total_blocks, num_cores)
    has_excess = num_cores * steps_per_core != total_blocks
    needs_mask = total_blocks * tile_rows != rows

    if has_excess:
        # Clamp excess trailing blocks of the last core onto a valid block;
        # the kernel skips their contribution via the g > last guard.
        in_map = lambda c, i: (jnp.minimum(c * steps_per_core + i,
                                           total_blocks - 1), 0)
    else:
        in_map = lambda c, i: (c * steps_per_core + i, 0)

    kernel = functools.partial(
        _mae_kernel, n_rows=rows, tile_rows=tile_rows, chunk_rows=chunk_rows,
        steps_per_core=steps_per_core, total_blocks=total_blocks,
        needs_mask=needs_mask, has_excess=has_excess)

    partials = pl.pallas_call(
        kernel,
        out_shape=jax.ShapeDtypeStruct((num_cores, 1), jnp.float32),
        grid_spec=pltpu.PrefetchScalarGridSpec(
            num_scalar_prefetch=0,
            grid=(num_cores, steps_per_core),
            in_specs=[
                pl.BlockSpec((tile_rows, _LANES), in_map),
                pl.BlockSpec((tile_rows, _LANES), in_map),
            ],
            out_specs=pl.BlockSpec((1, 1), lambda c, i: (c, 0)),
            scratch_shapes=[pltpu.VMEM((_SUBLANES, _LANES), jnp.float32)],
        ),
        compiler_params=pltpu.CompilerParams(
            dimension_semantics=("parallel", "arbitrary"),
            vmem_limit_bytes=_VMEM_LIMIT_BYTES,
        ),
        cost_estimate=pl.CostEstimate(
            flops=3 * main,
            transcendentals=0,
            bytes_accessed=main * (isz_p + isz_t) + num_cores * 4,
        ),
    )(yp2, yt2)

    return (jnp.sum(partials) + tail_sum) / jnp.float32(n)


if __name__ == "__main__":
    key = jax.random.PRNGKey(0)
    k1, k2 = jax.random.split(key)
    # Shapes consistent with a denoising net output: NCHW (2, 4, 16, 16).
    y_pred = jax.random.normal(k1, (2, 4, 16, 16), dtype=jnp.float32)
    y_true = jax.random.normal(k2, (2, 4, 16, 16), dtype=jnp.float32)

    loss = jax.block_until_ready(mae_loss(y_pred, y_true))
    ref = jnp.mean(jnp.abs(y_pred - y_true))
    assert jnp.allclose(loss, ref, rtol=1e-6, atol=1e-6), (loss, ref)

    # Ragged size (wrapper tail path + in-kernel row masking) + bf16 upcast.
    k3, k4 = jax.random.split(k2)
    a = jax.random.normal(k3, (3, 5, 7, 11), dtype=jnp.bfloat16)
    b = jax.random.normal(k4, (3, 5, 7, 11), dtype=jnp.bfloat16)
    loss2 = jax.block_until_ready(mae_loss(a, b))
    ref2 = jnp.mean(jnp.abs(a.astype(jnp.float32) - b.astype(jnp.float32)))
    assert jnp.allclose(loss2, ref2, rtol=1e-5, atol=1e-5), (loss2, ref2)

    # Multi-block case: exercises the 2-way core split, the clamped excess
    # block (odd block count) and last-block masking.
    k5, k6 = jax.random.split(k4)
    c = jax.random.normal(k5, (5, 1000, 1024), dtype=jnp.float32)
    d = jax.random.normal(k6, (5, 1000, 1024), dtype=jnp.float32)
    loss3 = jax.block_until_ready(mae_loss(c, d))
    ref3 = jnp.mean(jnp.abs(c - d))
    assert jnp.allclose(loss3, ref3, rtol=1e-5, atol=1e-5), (loss3, ref3)

    print("KERNEL_OK")
</pallas_src>

<mosaic_0001>
module attributes {stable_mosaic.version = 11 : i64} {
  func.func @_mae_kernel(%arg0: i32, %arg1: i32, %arg2: memref<16x128xf32, #tpu.memory_space<vmem>>, %arg3: memref<16x128xf32, #tpu.memory_space<vmem>>, %arg4: memref<1x1xf32, #tpu.memory_space<vmem>>, %arg5: memref<8x128xf32, #tpu.memory_space<vmem>>) attributes {dimension_semantics = [#tpu.dimension_semantics<parallel>, #tpu.dimension_semantics<arbitrary>], iteration_bounds = array<i64: 1, 1>, scalar_prefetch = 0 : i64, scratch_operands = 1 : i64, tpu.core_type = #tpu.core_type<tc>, window_params = [{transform_indices = @transform_0, window_bounds = array<i64: 16, 128>}, {transform_indices = @transform_1, window_bounds = array<i64: 16, 128>}, {transform_indices = @transform_2, window_bounds = array<i64: 1, 1>}]} {
    %c0_i32 = arith.constant 0 : i32
    %0 = arith.cmpi eq, %arg1, %c0_i32 : i32
    %1 = arith.extui %0 : i1 to i32
    %c0_i32_0 = arith.constant 0 : i32
    %2 = arith.cmpi ne, %1, %c0_i32_0 : i32
    scf.if %2 {
      %cst_10 = arith.constant 0.000000e+00 : f32
      %21 = vector.broadcast %cst_10 : f32 to vector<8x128xf32>
      %c0_11 = arith.constant 0 : index
      %c0_12 = arith.constant 0 : index
      %22 = vector.load %arg5[%c0_11, %c0_12] : memref<8x128xf32, #tpu.memory_space<vmem>>, vector<8x128xf32>
      tpu.vector_store %arg5[%c0_11, %c0_12], %21 {strides = array<i32>} : memref<8x128xf32, #tpu.memory_space<vmem>>, vector<8x128xf32>,
    } else {
    }
    %c0 = arith.constant 0 : index
    %c0_1 = arith.constant 0 : index
    %3 = vector.load %arg5[%c0, %c0_1] : memref<8x128xf32, #tpu.memory_space<vmem>>, vector<8x128xf32>
    %cst = arith.constant 0.000000e+00 : f32
    %4 = vector.broadcast %cst : f32 to vector<8x128xf32>
    %c0_i32_2 = arith.constant 0 : i32
    %c16_i32 = arith.constant 16 : i32
    %5 = arith.muli %c0_i32_2, %c16_i32 : i32
    %6 = tpu.assume_multiple %5, 16 : i32
    %7 = arith.index_cast %6 : i32 to index
    %c0_3 = arith.constant 0 : index
    %8 = vector.load %arg2[%7, %c0_3] : memref<16x128xf32, #tpu.memory_space<vmem>>, vector<16x128xf32>
    %9 = arith.index_cast %6 : i32 to index
    %c0_4 = arith.constant 0 : index
    %10 = vector.load %arg3[%9, %c0_4] : memref<16x128xf32, #tpu.memory_space<vmem>>, vector<16x128xf32>
    %11 = arith.subf %8, %10 : vector<16x128xf32>
    %12 = math.absf %11 : vector<16x128xf32>
    %13 = vector.shape_cast %12 : vector<16x128xf32> to vector<2x8x128xf32>
    %cst_5 = arith.constant dense<0.000000e+00> : vector<8x128xf32>
    %14 = vector.multi_reduction <add>, %13, %cst_5 [0] : vector<2x8x128xf32> to vector<8x128xf32>
    %15 = arith.addf %4, %14 : vector<8x128xf32>
    %c1_i32 = arith.constant 1 : i32
    %16 = arith.addf %3, %15 : vector<8x128xf32>
    %c0_6 = arith.constant 0 : index
    %c0_7 = arith.constant 0 : index
    %17 = vector.load %arg5[%c0_6, %c0_7] : memref<8x128xf32, #tpu.memory_space<vmem>>, vector<8x128xf32>
    tpu.vector_store %arg5[%c0_6, %c0_7], %16 {strides = array<i32>} : memref<8x128xf32, #tpu.memory_space<vmem>>, vector<8x128xf32>,
    %c0_i32_8 = arith.constant 0 : i32
    %18 = arith.cmpi eq, %arg1, %c0_i32_8 : i32
    %19 = arith.extui %18 : i1 to i32
    %c0_i32_9 = arith.constant 0 : i32
    %20 = arith.cmpi ne, %19, %c0_i32_9 : i32
    scf.if %20 {
      %c0_10 = arith.constant 0 : index
      %c0_11 = arith.constant 0 : index
      %21 = vector.load %arg5[%c0_10, %c0_11] : memref<8x128xf32, #tpu.memory_space<vmem>>, vector<8x128xf32>
      %22 = vector.shape_cast %21 : vector<8x128xf32> to vector<1x8x128xf32>
      %cst_12 = arith.constant dense<0.000000e+00> : vector<1xf32>
      %23 = vector.multi_reduction <add>, %22, %cst_12 [1, 2] : vector<1x8x128xf32> to vector<1xf32>
      %24 = vector.shape_cast %23 : vector<1xf32> to vector<1x1x1xf32>
      %25 = vector.extract %24[0, 0, 0] : f32 from vector<1x1x1xf32>
      %26 = vector.broadcast %25 : f32 to vector<1x1xf32>
      %c0_13 = arith.constant 0 : index
      %c0_14 = arith.constant 0 : index
      %27 = vector.load %arg4[%c0_13, %c0_14] : memref<1x1xf32, #tpu.memory_space<vmem>>, vector<1x1xf32>
      tpu.vector_store %arg4[%c0_13, %c0_14], %26 {strides = array<i32>} : memref<1x1xf32, #tpu.memory_space<vmem>>, vector<1x1xf32>,
    } else {
    }
    return
  }
  func.func @transform_0(%arg0: i32, %arg1: i32) -> (i32, i32) {
    %c1_i32 = arith.constant 1 : i32
    %0 = arith.muli %arg0, %c1_i32 : i32
    %1 = arith.addi %0, %arg1 : i32
    %c0_i32 = arith.constant 0 : i32
    %c0_i32_0 = arith.constant 0 : i32
    return %1, %c0_i32 : i32, i32
  }
  func.func @transform_1(%arg0: i32, %arg1: i32) -> (i32, i32) {
    %c1_i32 = arith.constant 1 : i32
    %0 = arith.muli %arg0, %c1_i32 : i32
    %1 = arith.addi %0, %arg1 : i32
    %c0_i32 = arith.constant 0 : i32
    %c0_i32_0 = arith.constant 0 : i32
    return %1, %c0_i32 : i32, i32
  }
  func.func @transform_2(%arg0: i32, %arg1: i32) -> (i32, i32) {
    %c0_i32 = arith.constant 0 : i32
    %c0_i32_0 = arith.constant 0 : i32
    return %arg0, %c0_i32 : i32, i32
  }
}

</mosaic_0001>

<llo_original>
// kernel: tpu_custom_call.1
$region0: #{tpu_custom_call.1}
  #allocation0 [shape = 'u32[]', space=smem, size = 0x4, offset = 0x4, fixed_abs, tag = 'smem constant byte address 0x4 - core index']
  #allocation1 [shape = 'u32[144,128]{1,0:T(1,128)}', space=vmem, size = 0x12000, scoped, tag = 'internal scratch']
  #allocation2 [shape = 'f32[8,128]{1,0:T(8,128)}', space=vmem, size = 0x1000, scoped, tag = 'scratch operand']
  %s0 = inlined_call_operand.hbm [shape: f32[16,128], index: 0, kind: input, shape index: {}]
  %s1 = inlined_call_operand.hbm [shape: f32[16,128], index: 1, kind: input, shape index: {}]
  %s2 = inlined_call_operand.hbm [shape: f32[1,1], index: 2, kind: output, shape index: {}]
  %s3 = sld [smem:[#allocation0]]
  $region34: #{tpu_custom_call.1} parent=0
    _
  %s5 = ssub.s32 1, %s3
  %s6 = scalar_select 0, %s5, %s3
  $region1: #{tpu_custom_call.1} parent=0
    #allocation3 [shape = 'u8[8192]{0}', space=vmem, size = 0x2000, scoped, tag = 'input window, operand 0, single buffered']
    #allocation4 [shape = 's32[1]{0}', space=sflag, size = 0x4, scoped, tag = 'scoped memory for tpu_custom_call.1']
    #allocation5 [shape = 's32[1]{0}', space=sflag, size = 0x4, scoped, tag = 'scoped memory for tpu_custom_call.1']
    #allocation6 [shape = 'u8[8192]{0}', space=vmem, size = 0x2000, scoped, tag = 'input window, operand 1, single buffered']
    #allocation7 [shape = 's32[1]{0}', space=sflag, size = 0x4, scoped, tag = 'scoped memory for tpu_custom_call.1']
    #allocation8 [shape = 'u8[512]{0}', space=vmem, size = 0x400, scoped, tag = 'output window, operand 0, single buffered']
    %7 = vsyncpa [#allocation4], 0
    %8 = vsyncpa [#allocation7], 0
    %9 = vsyncpa [#allocation5], 0
    // Predicated region
    $region2: #{tpu_custom_call.1} parent=1 // pred_check
      _
    $region3: #{tpu_custom_call.1} parent=1 // pred_check_branch
      %11 = sbr.rel (0) target = $region5
    $region4: #{tpu_custom_call.1} parent=1 // pred_region
      %s12 = sadd.s32 0, 0
      %s13 = smul.u32 2, %s12
      %s15 = ssub.s32 256, 256
      %16 = vsyncadd [#allocation4], %s15
      %s17 = smul.addr %s13, 128
      %s18 = scalar_lea.hbm %s0, %s17
      %s19 = sshll.u32 [#allocation3], 4
      %s20 = int_to_ptr.vmem [resolvable:$true] %s19
      %25 = dma.hbm_to_vmem [thread:$0]  %s18, 256, %s20, [#allocation4], 128, 128, 8
    $region5: #{tpu_custom_call.1} parent=1 // pred_fallthru
      _
    // Predicated region
    $region6: #{tpu_custom_call.1} parent=1 // pred_check
      _
    $region7: #{tpu_custom_call.1} parent=1 // pred_check_branch
      %27 = sbr.rel (0) target = $region9
    $region8: #{tpu_custom_call.1} parent=1 // pred_region
      %s28 = sadd.s32 0, 0
      %s29 = smul.u32 2, %s28
      %s31 = ssub.s32 256, 256
      %32 = vsyncadd [#allocation7], %s31
      %s33 = smul.addr %s29, 128
      %s34 = scalar_lea.hbm %s1, %s33
      %s35 = sshll.u32 [#allocation6], 4
      %s36 = int_to_ptr.vmem [resolvable:$true] %s35
      %41 = dma.hbm_to_vmem [thread:$0]  %s34, 256, %s36, [#allocation7], 128, 128, 8
    $region9: #{tpu_custom_call.1} parent=1 // pred_fallthru
      _
    // Predicated region
    $region10: #{tpu_custom_call.1} parent=1 // pred_check
      _
    $region11: #{tpu_custom_call.1} parent=1 // pred_check_branch
      %43 = sbr.rel (0) target = $region13
    $region12: #{tpu_custom_call.1} parent=1 // pred_region
      %44 = dma.done [#allocation4], 256
    $region13: #{tpu_custom_call.1} parent=1 // pred_fallthru
      _
    // Predicated region
    $region14: #{tpu_custom_call.1} parent=1 // pred_check
      _
    $region15: #{tpu_custom_call.1} parent=1 // pred_check_branch
      %46 = sbr.rel (0) target = $region17
    $region16: #{tpu_custom_call.1} parent=1 // pred_region
      %47 = dma.done [#allocation7], 256
    $region17: #{tpu_custom_call.1} parent=1 // pred_fallthru
      _
    %s48 = sadd.s32 0, 0
    %s49 = smul.u32 2, %s48
    %s50 = sadd.s32 0, 0
    %s51 = smul.u32 2, %s50
    %p52 = scmp.eq.s32.totalorder 0, 0
    // Predicated region
    $region18: #{tpu_custom_call.1} parent=1 // pred_check
      %p53 = pneg %p52
    $region19: #{tpu_custom_call.1} parent=1 // pred_check_branch
      %55 = sbr.rel (%p53) target = $region21
    $region20: #{tpu_custom_call.1} parent=1 // pred_region
      %56 = vst [vmem:[#allocation2] sm:$0xff] 0.0
    $region21: #{tpu_custom_call.1} parent=1 // pred_fallthru
      _
    %v57 = vld [vmem:[#allocation2] sm:$0xff]
    %v58 = vld [vmem:[#allocation3] sm:$0xff]
    %v59 = vld [vmem:[#allocation3 + $0x8] sm:$0xff]
    %v60 = vld [vmem:[#allocation6] sm:$0xff]
    %v61 = vld [vmem:[#allocation6 + $0x8] sm:$0xff]
    %v62 = vsub.f32 %v58, %v60
    %v63 = vsub.f32 %v59, %v61
    %v64 = vand.u32 2147483647, %v62
    %v65 = vand.u32 2147483647, %v63
    %v66 = vadd.f32 %v64, %v65
    %v67 = vadd.f32 %v66, 0.0
    %v68 = vadd.f32 %v57, %v67
    %69 = vst [vmem:[#allocation2] sm:$0xff] %v68
    // Predicated region
    $region22: #{tpu_custom_call.1} parent=1 // pred_check
      %p70 = pneg %p52
    $region23: #{tpu_custom_call.1} parent=1 // pred_check_branch
      %72 = sbr.rel (%p70) target = $region25
    $region24: #{tpu_custom_call.1} parent=1 // pred_region
      %v73 = vld [vmem:[#allocation2] sm:$0xff]
      %74 = vadd.xlane.f32.xlu0 %v73
      %v75 = vpop.xlane.xlu0 %74
      %v76 = vrot.slane %v75, 4
      %v77 = vadd.f32 %v75, %v76
      %v78 = vrot.slane %v77, 2
      %v79 = vadd.f32 %v77, %v78
      %v80 = vrot.slane %v79, 1
      %v81 = vadd.f32 %v79, %v80
      %s82 = vtos %v81
      %v83 = vstv %s82
      %vm84 = vcmask 0
      %85 = vst.msk [vmem:[#allocation8] sm:$0x1] %vm84, %v83
    $region25: #{tpu_custom_call.1} parent=1 // pred_fallthru
      _
    // Predicated region
    $region26: #{tpu_custom_call.1} parent=1 // pred_check
      _
    $region27: #{tpu_custom_call.1} parent=1 // pred_check_branch
      %87 = sbr.rel (0) target = $region29
    $region28: #{tpu_custom_call.1} parent=1 // pred_region
      %s89 = ssub.s32 16, 16
      %90 = vsyncadd [#allocation5], %s89
      %s92 = sshll.u32 [#allocation8], 4
      %s93 = int_to_ptr.vmem [resolvable:$true] %s92
      %95 = dma.vmem_to_hbm [thread:$0]  %s93, 16, %s2, [#allocation5]
    $region29: #{tpu_custom_call.1} parent=1 // pred_fallthru
      _
    // Predicated region
    $region30: #{tpu_custom_call.1} parent=1 // pred_check
      _
    $region31: #{tpu_custom_call.1} parent=1 // pred_check_branch
      %97 = sbr.rel (0) target = $region33
    $region32: #{tpu_custom_call.1} parent=1 // pred_region
      %98 = dma.done [#allocation5], 16
    $region33: #{tpu_custom_call.1} parent=1 // pred_fallthru
      _
    %99 = vsyncpa [#allocation4], 1
    %100 = vsyncpa [#allocation7], 1
    %101 = vsyncpa [#allocation5], 1

</llo_original>
